<compile_context>
chip_gen: v6e
topology: v6e:2x2x1
jax: 0.10.0
libtpu: 0.0.40
codegen_flags: <defaults>
</compile_context>

<pallas_src>
import jax
import jax.numpy as jnp
from jax.experimental import pallas as pl
from jax.experimental.pallas import tpu as pltpu

_LANES = 128
_SUBLANES = 8
_INV_SQRT2 = 0.7071067811865476


def _erfc_pos(z):
    # Numerical Recipes rational approximation of erfc(z) for z >= 0,
    # max abs error ~1.2e-7 (below float32 round-off for this use).
    t = 1.0 / (1.0 + 0.5 * z)
    poly = (-1.26551223 + t * (1.00002368 + t * (0.37409196 + t * (0.09678418 +
            t * (-0.18628806 + t * (0.27886807 + t * (-1.13520398 + t * (1.48851587 +
            t * (-0.82215223 + t * 0.17087277)))))))))
    return t * jnp.exp(-z * z + poly)


def _std_normal_cdf(x):
    # Phi(x) = 0.5 * erfc(-x / sqrt(2)); only mul/add/abs/where (VPU) + exp (EUP).
    z = -x * _INV_SQRT2
    az = jnp.abs(z)
    ec = _erfc_pos(az)
    ec = jnp.where(z >= 0.0, ec, 2.0 - ec)
    return 0.5 * ec


def toy_forward_kernel(w_cubic_ref, w_linear_ref, nstd_ref,
                       params_ref, noise_ref, true_ref, noised_ref):
    # params_ref: (tm, 128) lane-dense slab of batch elements (N on lanes).
    # noise_ref / true_ref / noised_ref: (D, tm, 128) lane-dense slabs.
    # w_cubic_ref = design (D,), w_linear_ref = exp(-|0.2 - design|) (D,),
    # nstd_ref = (1,) noise std  -- all scalars in SMEM.
    p = _std_normal_cdf(params_ref[...])        # (tm, 128), computed once per element
    p3 = p * p * p
    nstd = nstd_ref[0]
    d = true_ref.shape[0]
    for j in range(d):                          # static loop, D == observation_dim == 2
        t = p3 * w_cubic_ref[j] + p * w_linear_ref[j]
        true_ref[j] = t
        noised_ref[j] = t + nstd * noise_ref[j]


def toy_forward(parameters, design, noise_key, noise_std=0.01, block_rows=512):
    """Equivalent of Toy.forward. Returns (true_obs, noised_obs), each (N, D)."""
    params = jnp.asarray(parameters, jnp.float32).reshape(-1)     # (N,)
    design1d = jnp.asarray(design, jnp.float32).reshape(-1)       # (D,)
    n = params.shape[0]
    d = design1d.shape[0]

    # Lane-dense layout: N -> (rows, 128); rows padded to a multiple of the tile.
    rows = -(-n // _LANES)
    rows_aligned = -(-rows // _SUBLANES) * _SUBLANES
    tm = min(block_rows, rows_aligned)
    tm = -(-tm // _SUBLANES) * _SUBLANES
    rows_pad = -(-rows_aligned // tm) * tm
    n_pad = rows_pad * _LANES

    params_2d = jnp.pad(params, (0, n_pad - n)).reshape(rows_pad, _LANES)

    # Standard-normal noise generated outside the kernel (see TODO above),
    # already in the kernel's lane-dense (D, rows, 128) layout.
    noise = jax.random.normal(noise_key, (d, rows_pad, _LANES), dtype=jnp.float32)

    # Design-only constants, hoisted once (never recomputed per tile).
    w_cubic = design1d                                   # multiplies p**3
    w_linear = jnp.exp(-jnp.abs(0.2 - design1d))         # multiplies p
    nstd = jnp.asarray([noise_std], dtype=jnp.float32)   # SMEM scalar -> no recompile

    grid = (rows_pad // tm,)
    lane_spec = pl.BlockSpec((tm, _LANES), lambda i: (i, 0))
    col_spec = pl.BlockSpec((d, tm, _LANES), lambda i: (0, i, 0))
    smem_spec = pl.BlockSpec(memory_space=pltpu.MemorySpace.SMEM)

    true_t, noised_t = pl.pallas_call(
        toy_forward_kernel,
        out_shape=(jax.ShapeDtypeStruct((d, rows_pad, _LANES), jnp.float32),
                   jax.ShapeDtypeStruct((d, rows_pad, _LANES), jnp.float32)),
        grid=grid,
        in_specs=[smem_spec, smem_spec, smem_spec, lane_spec, col_spec],
        out_specs=(col_spec, col_spec),
        compiler_params=pltpu.CompilerParams(
            dimension_semantics=("parallel",),
            vmem_limit_bytes=32 * 1024 * 1024),
    )(w_cubic, w_linear, nstd, params_2d, noise)

    def _unpack(x):  # (D, rows_pad, 128) -> (N, D)
        return x.reshape(d, n_pad).T[:n]

    return _unpack(true_t), _unpack(noised_t)


if __name__ == "__main__":
    key = jax.random.PRNGKey(0)
    k_param, k_noise = jax.random.split(key)

    # Toy: observation_dim = 2, design in [0,1]^2, single latent parameter.
    init_design = jnp.array([0.4, 0.7], dtype=jnp.float32)
    noise_std = 0.01
    n_batch = 8
    parameters = jax.random.normal(k_param, (n_batch, 1), dtype=jnp.float32)

    true_obs, noised_obs = toy_forward(parameters, init_design, k_noise,
                                       noise_std=noise_std)
    jax.block_until_ready((true_obs, noised_obs))

    # Pure-JAX reference for the deterministic part (true_obs).
    p_ref = jax.scipy.stats.norm.cdf(parameters)                       # (N, 1)
    true_ref = (p_ref ** 3) * init_design[None, :] + \
               p_ref * jnp.exp(-jnp.abs(0.2 - init_design[None, :]))   # (N, 2)

    assert true_obs.shape == (n_batch, 2) and noised_obs.shape == (n_batch, 2)
    assert jnp.allclose(true_obs, true_ref, atol=1e-5), "true_obs mismatch"
    # noised_obs is stochastic; sanity-check it stays within a few sigma.
    assert float(jnp.max(jnp.abs(noised_obs - true_obs))) < 10.0 * noise_std

    print("KERNEL_OK")
</pallas_src>

<mosaic_0001>
module attributes {stable_mosaic.version = 11 : i64} {
  func.func @toy_forward_kernel(%arg0: i32, %arg1: memref<2xf32, #tpu.memory_space<smem>>, %arg2: memref<2xf32, #tpu.memory_space<smem>>, %arg3: memref<1xf32, #tpu.memory_space<smem>>, %arg4: memref<8x128xf32, #tpu.memory_space<vmem>>, %arg5: memref<2x8x128xf32, #tpu.memory_space<vmem>>, %arg6: memref<2x8x128xf32, #tpu.memory_space<vmem>>, %arg7: memref<2x8x128xf32, #tpu.memory_space<vmem>>) attributes {dimension_semantics = [#tpu.dimension_semantics<parallel>], iteration_bounds = array<i64: 1>, scalar_prefetch = 0 : i64, scratch_operands = 0 : i64, tpu.core_type = #tpu.core_type<tc>, window_params = [{transform_indices = @transform_0, window_bounds = array<i64: 2>}, {transform_indices = @transform_1, window_bounds = array<i64: 2>}, {transform_indices = @transform_2, window_bounds = array<i64: 1>}, {transform_indices = @transform_3, window_bounds = array<i64: 8, 128>}, {transform_indices = @transform_4, window_bounds = array<i64: 2, 8, 128>}, {transform_indices = @transform_5, window_bounds = array<i64: 2, 8, 128>}, {transform_indices = @transform_6, window_bounds = array<i64: 2, 8, 128>}]} {
    %c0 = arith.constant 0 : index
    %c0_0 = arith.constant 0 : index
    %0 = vector.load %arg4[%c0, %c0_0] : memref<8x128xf32, #tpu.memory_space<vmem>>, vector<8x128xf32>
    %cst = arith.constant 0.000000e+00 : f32
    %1 = vector.broadcast %cst : f32 to vector<8x128xf32>
    %2 = arith.subf %1, %0 : vector<8x128xf32>
    %cst_1 = arith.constant 0.707106769 : f32
    %3 = vector.broadcast %cst_1 : f32 to vector<8x128xf32>
    %4 = arith.mulf %2, %3 : vector<8x128xf32>
    %5 = math.absf %4 : vector<8x128xf32>
    %cst_2 = arith.constant 5.000000e-01 : f32
    %6 = vector.broadcast %cst_2 : f32 to vector<8x128xf32>
    %7 = arith.mulf %6, %5 : vector<8x128xf32>
    %cst_3 = arith.constant 1.000000e+00 : f32
    %8 = vector.broadcast %cst_3 : f32 to vector<8x128xf32>
    %9 = arith.addf %8, %7 : vector<8x128xf32>
    %cst_4 = arith.constant 1.000000e+00 : f32
    %10 = vector.broadcast %cst_4 : f32 to vector<8x128xf32>
    %11 = arith.divf %10, %9 : vector<8x128xf32>
    %cst_5 = arith.constant 0.170872763 : f32
    %12 = vector.broadcast %cst_5 : f32 to vector<8x128xf32>
    %13 = arith.mulf %11, %12 : vector<8x128xf32>
    %cst_6 = arith.constant -0.822152256 : f32
    %14 = vector.broadcast %cst_6 : f32 to vector<8x128xf32>
    %15 = arith.addf %14, %13 : vector<8x128xf32>
    %16 = arith.mulf %11, %15 : vector<8x128xf32>
    %cst_7 = arith.constant 1.48851585 : f32
    %17 = vector.broadcast %cst_7 : f32 to vector<8x128xf32>
    %18 = arith.addf %17, %16 : vector<8x128xf32>
    %19 = arith.mulf %11, %18 : vector<8x128xf32>
    %cst_8 = arith.constant -1.13520396 : f32
    %20 = vector.broadcast %cst_8 : f32 to vector<8x128xf32>
    %21 = arith.addf %20, %19 : vector<8x128xf32>
    %22 = arith.mulf %11, %21 : vector<8x128xf32>
    %cst_9 = arith.constant 0.278868079 : f32
    %23 = vector.broadcast %cst_9 : f32 to vector<8x128xf32>
    %24 = arith.addf %23, %22 : vector<8x128xf32>
    %25 = arith.mulf %11, %24 : vector<8x128xf32>
    %cst_10 = arith.constant -0.186288059 : f32
    %26 = vector.broadcast %cst_10 : f32 to vector<8x128xf32>
    %27 = arith.addf %26, %25 : vector<8x128xf32>
    %28 = arith.mulf %11, %27 : vector<8x128xf32>
    %cst_11 = arith.constant 0.0967841818 : f32
    %29 = vector.broadcast %cst_11 : f32 to vector<8x128xf32>
    %30 = arith.addf %29, %28 : vector<8x128xf32>
    %31 = arith.mulf %11, %30 : vector<8x128xf32>
    %cst_12 = arith.constant 0.374091953 : f32
    %32 = vector.broadcast %cst_12 : f32 to vector<8x128xf32>
    %33 = arith.addf %32, %31 : vector<8x128xf32>
    %34 = arith.mulf %11, %33 : vector<8x128xf32>
    %cst_13 = arith.constant 1.00002372 : f32
    %35 = vector.broadcast %cst_13 : f32 to vector<8x128xf32>
    %36 = arith.addf %35, %34 : vector<8x128xf32>
    %37 = arith.mulf %11, %36 : vector<8x128xf32>
    %cst_14 = arith.constant -1.26551223 : f32
    %38 = vector.broadcast %cst_14 : f32 to vector<8x128xf32>
    %39 = arith.addf %38, %37 : vector<8x128xf32>
    %cst_15 = arith.constant 0.000000e+00 : f32
    %40 = vector.broadcast %cst_15 : f32 to vector<8x128xf32>
    %41 = arith.subf %40, %5 : vector<8x128xf32>
    %42 = arith.mulf %41, %5 : vector<8x128xf32>
    %43 = arith.addf %42, %39 : vector<8x128xf32>
    %44 = math.exp %43 : vector<8x128xf32>
    %45 = arith.mulf %11, %44 : vector<8x128xf32>
    %cst_16 = arith.constant 0.000000e+00 : f32
    %46 = vector.broadcast %cst_16 : f32 to vector<8x128xf32>
    %47 = arith.cmpf oge, %4, %46 : vector<8x128xf32>
    %cst_17 = arith.constant 2.000000e+00 : f32
    %48 = vector.broadcast %cst_17 : f32 to vector<8x128xf32>
    %49 = arith.subf %48, %45 : vector<8x128xf32>
    %50 = arith.select %47, %45, %49 : vector<8x128xi1>, vector<8x128xf32>
    %cst_18 = arith.constant 5.000000e-01 : f32
    %51 = vector.broadcast %cst_18 : f32 to vector<8x128xf32>
    %52 = arith.mulf %51, %50 : vector<8x128xf32>
    %53 = arith.mulf %52, %52 : vector<8x128xf32>
    %54 = arith.mulf %53, %52 : vector<8x128xf32>
    %c0_19 = arith.constant 0 : index
    %55 = memref.load %arg3[%c0_19] : memref<1xf32, #tpu.memory_space<smem>>
    %c0_20 = arith.constant 0 : index
    %56 = memref.load %arg1[%c0_20] : memref<2xf32, #tpu.memory_space<smem>>
    %57 = vector.broadcast %56 : f32 to vector<8x128xf32>
    %58 = arith.mulf %54, %57 : vector<8x128xf32>
    %c0_21 = arith.constant 0 : index
    %59 = memref.load %arg2[%c0_21] : memref<2xf32, #tpu.memory_space<smem>>
    %60 = vector.broadcast %59 : f32 to vector<8x128xf32>
    %61 = arith.mulf %52, %60 : vector<8x128xf32>
    %62 = arith.addf %58, %61 : vector<8x128xf32>
    %c0_22 = arith.constant 0 : index
    %c0_23 = arith.constant 0 : index
    %c0_24 = arith.constant 0 : index
    %63 = vector.load %arg6[%c0_22, %c0_23, %c0_24] : memref<2x8x128xf32, #tpu.memory_space<vmem>>, vector<1x8x128xf32>
    %64 = vector.shape_cast %63 : vector<1x8x128xf32> to vector<8x128xf32>
    %65 = vector.shape_cast %62 : vector<8x128xf32> to vector<1x8x128xf32>
    tpu.vector_store %arg6[%c0_22, %c0_23, %c0_24], %65 {strides = array<i32>} : memref<2x8x128xf32, #tpu.memory_space<vmem>>, vector<1x8x128xf32>,
    %c0_25 = arith.constant 0 : index
    %c0_26 = arith.constant 0 : index
    %c0_27 = arith.constant 0 : index
    %66 = vector.load %arg5[%c0_25, %c0_26, %c0_27] : memref<2x8x128xf32, #tpu.memory_space<vmem>>, vector<1x8x128xf32>
    %67 = vector.shape_cast %66 : vector<1x8x128xf32> to vector<8x128xf32>
    %68 = vector.broadcast %55 : f32 to vector<8x128xf32>
    %69 = arith.mulf %68, %67 : vector<8x128xf32>
    %70 = arith.addf %62, %69 : vector<8x128xf32>
    %c0_28 = arith.constant 0 : index
    %c0_29 = arith.constant 0 : index
    %c0_30 = arith.constant 0 : index
    %71 = vector.load %arg7[%c0_28, %c0_29, %c0_30] : memref<2x8x128xf32, #tpu.memory_space<vmem>>, vector<1x8x128xf32>
    %72 = vector.shape_cast %71 : vector<1x8x128xf32> to vector<8x128xf32>
    %73 = vector.shape_cast %70 : vector<8x128xf32> to vector<1x8x128xf32>
    tpu.vector_store %arg7[%c0_28, %c0_29, %c0_30], %73 {strides = array<i32>} : memref<2x8x128xf32, #tpu.memory_space<vmem>>, vector<1x8x128xf32>,
    %c1 = arith.constant 1 : index
    %74 = memref.load %arg1[%c1] : memref<2xf32, #tpu.memory_space<smem>>
    %75 = vector.broadcast %74 : f32 to vector<8x128xf32>
    %76 = arith.mulf %54, %75 : vector<8x128xf32>
    %c1_31 = arith.constant 1 : index
    %77 = memref.load %arg2[%c1_31] : memref<2xf32, #tpu.memory_space<smem>>
    %78 = vector.broadcast %77 : f32 to vector<8x128xf32>
    %79 = arith.mulf %52, %78 : vector<8x128xf32>
    %80 = arith.addf %76, %79 : vector<8x128xf32>
    %c1_32 = arith.constant 1 : index
    %c0_33 = arith.constant 0 : index
    %c0_34 = arith.constant 0 : index
    %81 = vector.load %arg6[%c1_32, %c0_33, %c0_34] : memref<2x8x128xf32, #tpu.memory_space<vmem>>, vector<1x8x128xf32>
    %82 = vector.shape_cast %81 : vector<1x8x128xf32> to vector<8x128xf32>
    %83 = vector.shape_cast %80 : vector<8x128xf32> to vector<1x8x128xf32>
    tpu.vector_store %arg6[%c1_32, %c0_33, %c0_34], %83 {strides = array<i32>} : memref<2x8x128xf32, #tpu.memory_space<vmem>>, vector<1x8x128xf32>,
    %c1_35 = arith.constant 1 : index
    %c0_36 = arith.constant 0 : index
    %c0_37 = arith.constant 0 : index
    %84 = vector.load %arg5[%c1_35, %c0_36, %c0_37] : memref<2x8x128xf32, #tpu.memory_space<vmem>>, vector<1x8x128xf32>
    %85 = vector.shape_cast %84 : vector<1x8x128xf32> to vector<8x128xf32>
    %86 = vector.broadcast %55 : f32 to vector<8x128xf32>
    %87 = arith.mulf %86, %85 : vector<8x128xf32>
    %88 = arith.addf %80, %87 : vector<8x128xf32>
    %c1_38 = arith.constant 1 : index
    %c0_39 = arith.constant 0 : index
    %c0_40 = arith.constant 0 : index
    %89 = vector.load %arg7[%c1_38, %c0_39, %c0_40] : memref<2x8x128xf32, #tpu.memory_space<vmem>>, vector<1x8x128xf32>
    %90 = vector.shape_cast %89 : vector<1x8x128xf32> to vector<8x128xf32>
    %91 = vector.shape_cast %88 : vector<8x128xf32> to vector<1x8x128xf32>
    tpu.vector_store %arg7[%c1_38, %c0_39, %c0_40], %91 {strides = array<i32>} : memref<2x8x128xf32, #tpu.memory_space<vmem>>, vector<1x8x128xf32>,
    return
  }
  func.func @transform_0(%arg0: i32) -> i32 {
    %c0_i32 = arith.constant 0 : i32
    %c0_i32_0 = arith.constant 0 : i32
    return %c0_i32 : i32
  }
  func.func @transform_1(%arg0: i32) -> i32 {
    %c0_i32 = arith.constant 0 : i32
    %c0_i32_0 = arith.constant 0 : i32
    return %c0_i32 : i32
  }
  func.func @transform_2(%arg0: i32) -> i32 {
    %c0_i32 = arith.constant 0 : i32
    %c0_i32_0 = arith.constant 0 : i32
    return %c0_i32 : i32
  }
  func.func @transform_3(%arg0: i32) -> (i32, i32) {
    %c0_i32 = arith.constant 0 : i32
    %c0_i32_0 = arith.constant 0 : i32
    return %arg0, %c0_i32 : i32, i32
  }
  func.func @transform_4(%arg0: i32) -> (i32, i32, i32) {
    %c0_i32 = arith.constant 0 : i32
    %c0_i32_0 = arith.constant 0 : i32
    %c0_i32_1 = arith.constant 0 : i32
    return %c0_i32, %arg0, %c0_i32_0 : i32, i32, i32
  }
  func.func @transform_5(%arg0: i32) -> (i32, i32, i32) {
    %c0_i32 = arith.constant 0 : i32
    %c0_i32_0 = arith.constant 0 : i32
    %c0_i32_1 = arith.constant 0 : i32
    return %c0_i32, %arg0, %c0_i32_0 : i32, i32, i32
  }
  func.func @transform_6(%arg0: i32) -> (i32, i32, i32) {
    %c0_i32 = arith.constant 0 : i32
    %c0_i32_0 = arith.constant 0 : i32
    %c0_i32_1 = arith.constant 0 : i32
    return %c0_i32, %arg0, %c0_i32_0 : i32, i32, i32
  }
}

</mosaic_0001>

<llo_original>
// kernel: tpu_custom_call.1
$region0: #{tpu_custom_call.1}
  #allocation0 [shape = 'u32[]', space=smem, size = 0x4, offset = 0x4, fixed_abs, tag = 'smem constant byte address 0x4 - core index']
  #allocation1 [shape = 'u32[144,128]{1,0:T(1,128)}', space=vmem, size = 0x12000, scoped, tag = 'internal scratch']
  #allocation2 [shape = 'f32[1]{0:T(128)S(6)}', space=smem, size = 0x200, scoped, tag = 'scoped memory for tpu_custom_call.1']
  %s0 = inlined_call_operand.vmem [shape: f32[2], index: 0, kind: input, shape index: {}]
  %s1 = inlined_call_operand.vmem [shape: f32[2], index: 1, kind: input, shape index: {}]
  %s2 = inlined_call_operand.<no memory space> [shape: f32[1], index: 2, kind: input, shape index: {}]
  %s3 = inlined_call_operand.hbm [shape: f32[8,128], index: 3, kind: input, shape index: {}]
  %s4 = inlined_call_operand.hbm [shape: f32[2,8,128], index: 4, kind: input, shape index: {}]
  %s5 = inlined_call_operand.hbm [shape: f32[2,8,128], index: 5, kind: output, shape index: {0}]
  %s6 = inlined_call_operand.hbm [shape: f32[2,8,128], index: 6, kind: output, shape index: {1}]
  %7 = xla_tuple %s5, %s6
  %s8 = sld [smem:[#allocation0]]
  $region54: #{tpu_custom_call.1} parent=0
    _
  %s10 = ssub.s32 1, %s8
  %s11 = scalar_select 0, %s10, %s8
  %12 = sst [smem:[#allocation2]] %s2
  $region1: #{tpu_custom_call.1} parent=0
    #allocation3 [shape = 'u8[512]{0}', space=smem, size = 0x200, scoped, tag = 'input window, operand 0, single buffered']
    #allocation4 [shape = 's32[1]{0}', space=sflag, size = 0x4, scoped, tag = 'scoped memory for tpu_custom_call.1']
    #allocation5 [shape = 's32[1]{0}', space=sflag, size = 0x4, scoped, tag = 'scoped memory for tpu_custom_call.1']
    #allocation6 [shape = 's32[1]{0}', space=sflag, size = 0x4, scoped, tag = 'scoped memory for tpu_custom_call.1']
    #allocation7 [shape = 'u8[512]{0}', space=smem, size = 0x200, scoped, tag = 'input window, operand 1, single buffered']
    #allocation8 [shape = 's32[1]{0}', space=sflag, size = 0x4, scoped, tag = 'scoped memory for tpu_custom_call.1']
    #allocation9 [shape = 'u8[4096]{0}', space=vmem, size = 0x1000, scoped, tag = 'input window, operand 3, single buffered']
    #allocation10 [shape = 'u8[8192]{0}', space=vmem, size = 0x2000, scoped, tag = 'input window, operand 4, single buffered']
    #allocation11 [shape = 's32[1]{0}', space=sflag, size = 0x4, scoped, tag = 'scoped memory for tpu_custom_call.1']
    #allocation12 [shape = 'u8[8192]{0}', space=vmem, size = 0x2000, scoped, tag = 'output window, operand 0, single buffered']
    #allocation13 [shape = 'u8[8192]{0}', space=vmem, size = 0x2000, scoped, tag = 'output window, operand 1, single buffered']
    #allocation14 [shape = 's32[1]{0}', space=sflag, size = 0x4, scoped, tag = 'scoped memory for tpu_custom_call.1']
    %13 = vsyncpa [#allocation6], 0
    %14 = vsyncpa [#allocation8], 0
    %15 = vsyncpa [#allocation4], 0
    %16 = vsyncpa [#allocation11], 0
    %17 = vsyncpa [#allocation5], 0
    %18 = vsyncpa [#allocation14], 0
    // Predicated region
    $region2: #{tpu_custom_call.1} parent=1 // pred_check
      _
    $region3: #{tpu_custom_call.1} parent=1 // pred_check_branch
      %20 = sbr.rel (0) target = $region5
    $region4: #{tpu_custom_call.1} parent=1 // pred_region
      %s22 = ssub.s32 16, 16
      %23 = vsyncadd [#allocation6], %s22
      %s25 = sshll.u32 %s0, 4
      %s26 = int_to_ptr.vmem [resolvable:$true] %s25
      %28 = dma.vmem_to_smem %s26, 16, [#allocation3], [#allocation6]
    $region5: #{tpu_custom_call.1} parent=1 // pred_fallthru
      _
    // Predicated region
    $region6: #{tpu_custom_call.1} parent=1 // pred_check
      _
    $region7: #{tpu_custom_call.1} parent=1 // pred_check_branch
      %30 = sbr.rel (0) target = $region9
    $region8: #{tpu_custom_call.1} parent=1 // pred_region
      %s32 = ssub.s32 16, 16
      %33 = vsyncadd [#allocation8], %s32
      %s35 = sshll.u32 %s1, 4
      %s36 = int_to_ptr.vmem [resolvable:$true] %s35
      %38 = dma.vmem_to_smem %s36, 16, [#allocation7], [#allocation8]
    $region9: #{tpu_custom_call.1} parent=1 // pred_fallthru
      _
    // Predicated region
    $region10: #{tpu_custom_call.1} parent=1 // pred_check
      _
    $region11: #{tpu_custom_call.1} parent=1 // pred_check_branch
      %40 = sbr.rel (0) target = $region13
    $region12: #{tpu_custom_call.1} parent=1 // pred_region
      _
    $region13: #{tpu_custom_call.1} parent=1 // pred_fallthru
      _
    // Predicated region
    $region14: #{tpu_custom_call.1} parent=1 // pred_check
      _
    $region15: #{tpu_custom_call.1} parent=1 // pred_check_branch
      %42 = sbr.rel (0) target = $region17
    $region16: #{tpu_custom_call.1} parent=1 // pred_region
      %s44 = ssub.s32 128, 128
      %45 = vsyncadd [#allocation4], %s44
      %s47 = sshll.u32 [#allocation9], 4
      %s48 = int_to_ptr.vmem [resolvable:$true] %s47
      %50 = dma.hbm_to_vmem [thread:$0]  %s3, 128, %s48, [#allocation4]
    $region17: #{tpu_custom_call.1} parent=1 // pred_fallthru
      _
    // Predicated region
    $region18: #{tpu_custom_call.1} parent=1 // pred_check
      _
    $region19: #{tpu_custom_call.1} parent=1 // pred_check_branch
      %52 = sbr.rel (0) target = $region21
    $region20: #{tpu_custom_call.1} parent=1 // pred_region
      %s54 = ssub.s32 256, 256
      %55 = vsyncadd [#allocation11], %s54
      %s56 = sshll.u32 [#allocation10], 4
      %s57 = int_to_ptr.vmem [resolvable:$true] %s56
      %62 = dma.hbm_to_vmem [thread:$0]  %s4, 256, %s57, [#allocation11], 128, 128, 8
    $region21: #{tpu_custom_call.1} parent=1 // pred_fallthru
      _
    // Predicated region
    $region22: #{tpu_custom_call.1} parent=1 // pred_check
      _
    $region23: #{tpu_custom_call.1} parent=1 // pred_check_branch
      %64 = sbr.rel (0) target = $region25
    $region24: #{tpu_custom_call.1} parent=1 // pred_region
      %65 = dma.done [#allocation6], 16
    $region25: #{tpu_custom_call.1} parent=1 // pred_fallthru
      _
    // Predicated region
    $region26: #{tpu_custom_call.1} parent=1 // pred_check
      _
    $region27: #{tpu_custom_call.1} parent=1 // pred_check_branch
      %67 = sbr.rel (0) target = $region29
    $region28: #{tpu_custom_call.1} parent=1 // pred_region
      %68 = dma.done [#allocation8], 16
    $region29: #{tpu_custom_call.1} parent=1 // pred_fallthru
      _
    // Predicated region
    $region30: #{tpu_custom_call.1} parent=1 // pred_check
      _
    $region31: #{tpu_custom_call.1} parent=1 // pred_check_branch
      %70 = sbr.rel (0) target = $region33
    $region32: #{tpu_custom_call.1} parent=1 // pred_region
      %71 = dma.done [#allocation4], 128
    $region33: #{tpu_custom_call.1} parent=1 // pred_fallthru
      _
    // Predicated region
    $region34: #{tpu_custom_call.1} parent=1 // pred_check
      _
    $region35: #{tpu_custom_call.1} parent=1 // pred_check_branch
      %73 = sbr.rel (0) target = $region37
    $region36: #{tpu_custom_call.1} parent=1 // pred_region
      %74 = dma.done [#allocation11], 256
    $region37: #{tpu_custom_call.1} parent=1 // pred_fallthru
      _
    %75 = sfence
    %v76 = vld [vmem:[#allocation9] sm:$0xff]
    %v77 = vsub.f32 0.0, %v76
    %v78 = vmul.f32 %v77, 0.70710677
    %v79 = vand.u32 2147483647, %v78
    %v80 = vmul.f32 %v79, 0.5
    %v81 = vadd.f32 %v80, 1.0
    %v82 = vrcp.pop %v81
    %v83 = vmul.f32 1.0, %v82
    %v84 = vmul.f32 %v83, 0.17087276
    %v85 = vadd.f32 %v84, -0.82215226
    %v86 = vmul.f32 %v83, %v85
    %v87 = vadd.f32 %v86, 1.4885159
    %v88 = vmul.f32 %v83, %v87
    %v89 = vadd.f32 %v88, -1.135204
    %v90 = vmul.f32 %v83, %v89
    %v91 = vadd.f32 %v90, 0.27886808
    %v92 = vmul.f32 %v83, %v91
    %v93 = vadd.f32 %v92, -0.18628806
    %v94 = vmul.f32 %v83, %v93
    %v95 = vadd.f32 %v94, 0.09678418
    %v96 = vmul.f32 %v83, %v95
    %v97 = vadd.f32 %v96, 0.37409195
    %v98 = vmul.f32 %v83, %v97
    %v99 = vadd.f32 %v98, 1.0000237
    %v100 = vmul.f32 %v83, %v99
    %v101 = vadd.f32 %v100, -1.2655122
    %v102 = vsub.f32 0.0, %v79
    %v103 = vmul.f32 %v102, %v79
    %v104 = vadd.f32 %v103, %v101
    %v105 = vmul.f32 %v104, 1.442695
    %v106 = vpow.pop %v105
    %v107 = vmul.f32 %v83, %v106
    %vm108 = vcmp.ge.f32.partialorder %v78, 0.0
    %v109 = vsub.f32 2.0, %v107
    %v110 = vsel %vm108, %v107, %v109
    %v111 = vmul.f32 %v110, 0.5
    %v112 = vmul.f32 %v111, %v111
    %v113 = vmul.f32 %v112, %v111
    %s114 = sld [smem:[#allocation2]]
    %s115 = sld [smem:[#allocation3]]
    %v116 = vstv %s115
    %v117 = vmul.f32 %v113, %v116
    %s118 = sld [smem:[#allocation7]]
    %v119 = vstv %s118
    %v120 = vmul.f32 %v111, %v119
    %v121 = vadd.f32 %v117, %v120
    %122 = vst [vmem:[#allocation12] sm:$0xff] %v121
    %v123 = vld [vmem:[#allocation10] sm:$0xff]
    %v124 = vstv %s114
    %v125 = vmul.f32 %v124, %v123
    %v126 = vadd.f32 %v121, %v125
    %127 = vst [vmem:[#allocation13] sm:$0xff] %v126
    %s128 = sld [smem:[#allocation3 + $0x1]]
    %v129 = vstv %s128
    %v130 = vmul.f32 %v113, %v129
    %s131 = sld [smem:[#allocation7 + $0x1]]
    %v132 = vstv %s131
    %v133 = vmul.f32 %v111, %v132
    %v134 = vadd.f32 %v130, %v133
    %s135 = scalar_lea.vmem [#allocation12], 8
    %136 = vst [vmem:[%s135] sm:$0xff] %v134
    %s137 = scalar_lea.vmem [#allocation10], 8
    %v138 = vld [vmem:[%s137] sm:$0xff]
    %v139 = vmul.f32 %v124, %v138
    %v140 = vadd.f32 %v134, %v139
    %s141 = scalar_lea.vmem [#allocation13], 8
    %142 = vst [vmem:[%s141] sm:$0xff] %v140
    // Predicated region
    $region38: #{tpu_custom_call.1} parent=1 // pred_check
      _
    $region39: #{tpu_custom_call.1} parent=1 // pred_check_branch
      %144 = sbr.rel (0) target = $region41
    $region40: #{tpu_custom_call.1} parent=1 // pred_region
      %s146 = ssub.s32 256, 256
      %147 = vsyncadd [#allocation5], %s146
      %s148 = sshll.u32 [#allocation12], 4
      %s149 = int_to_ptr.vmem [resolvable:$true] %s148
      %154 = dma.vmem_to_hbm [thread:$0]  %s149, 256, %s5, [#allocation5], 128, 128, 8
    $region41: #{tpu_custom_call.1} parent=1 // pred_fallthru
      _
    // Predicated region
    $region42: #{tpu_custom_call.1} parent=1 // pred_check
      _
    $region43: #{tpu_custom_call.1} parent=1 // pred_check_branch
      %156 = sbr.rel (0) target = $region45
    $region44: #{tpu_custom_call.1} parent=1 // pred_region
      %s158 = ssub.s32 256, 256
      %159 = vsyncadd [#allocation14], %s158
      %s160 = sshll.u32 [#allocation13], 4
      %s161 = int_to_ptr.vmem [resolvable:$true] %s160
      %166 = dma.vmem_to_hbm [thread:$0]  %s161, 256, %s6, [#allocation14], 128, 128, 8
    $region45: #{tpu_custom_call.1} parent=1 // pred_fallthru
      _
    // Predicated region
    $region46: #{tpu_custom_call.1} parent=1 // pred_check
      _
    $region47: #{tpu_custom_call.1} parent=1 // pred_check_branch
      %168 = sbr.rel (0) target = $region49
    $region48: #{tpu_custom_call.1} parent=1 // pred_region
      %169 = dma.done [#allocation5], 256
    $region49: #{tpu_custom_call.1} parent=1 // pred_fallthru
      _
    // Predicated region
    $region50: #{tpu_custom_call.1} parent=1 // pred_check
      _
    $region51: #{tpu_custom_call.1} parent=1 // pred_check_branch
      %171 = sbr.rel (0) target = $region53
    $region52: #{tpu_custom_call.1} parent=1 // pred_region
      %172 = dma.done [#allocation14], 256
    $region53: #{tpu_custom_call.1} parent=1 // pred_fallthru
      _
    %173 = vsyncpa [#allocation4], 1
    %174 = vsyncpa [#allocation11], 1
    %175 = vsyncpa [#allocation5], 1
    %176 = vsyncpa [#allocation14], 1
    %177 = vsyncpa [#allocation6], 1
    %178 = vsyncpa [#allocation8], 1

</llo_original>
